<compile_context>
chip_gen: v7x
topology: tpu7x:2x2x1
jax: 0.10.0
libtpu: 0.0.40
codegen_flags: <defaults>
</compile_context>

<pallas_src>
import jax
import jax.numpy as jnp
from jax.experimental import pallas as pl
from jax.experimental.pallas import tpu as pltpu


def _disc_kernel(x_ref, w_ref, o_ref):
    # x_ref: (C, ts)  channel-major tile of one image (lane axis = spatial),
    #                  kept in its native dtype (bf16 feeds the MXU directly)
    # w_ref: (1, C)   conv weight as a dense f32 row, resident across the grid
    # o_ref: (1, ts)  lane-dense output tile
    x = x_ref[...]
    w = w_ref[...]
    if w.dtype != x.dtype:
        # Only the tiny (one-vreg) weight row is cast; the big tile is not.
        w = w.astype(x.dtype)
    logits = jnp.dot(w, x, preferred_element_type=jnp.float32)  # (1, ts), f32 acc
    o_ref[...] = jax.nn.sigmoid(logits).astype(o_ref.dtype)


def _vmem_budgets():
    """(per-input-tile byte budget, vmem_limit_bytes), generation-aware."""
    try:
        phys = pltpu.get_tpu_info().vmem_capacity_bytes
    except Exception:
        phys = 128 << 20  # assume v5e/v6e-class if the query is unavailable
    if phys <= (72 << 20):
        # v7x-class: 64 MiB physical per TensorCore.  Keep
        # 2 x (input tile) + output + weight under ~30 MiB scoped VMEM.
        return 12 << 20, 30 << 20
    # v5e / v6e: 128 MiB physical.  Larger streaming steps are pure win.
    return 16 << 20, 48 << 20


def _pick_spatial_tile(S, C, itemsize, tile_budget, batch):
    """Spatial tile size: as large as the VMEM budget allows, lane-aligned,
    with >= 2 total grid steps so both v7x TensorCores get work."""
    bytes_per_col = max(C * itemsize, 1)
    max_ts = max(128, (tile_budget // bytes_per_col) // 128 * 128)

    if S <= max_ts:
        # Whole (C, S) slab of one image fits: fully contiguous DMA per step.
        ts = S
    else:
        ts = max_ts
        if S % 128 == 0:
            # Prefer a divisor of S (no masked trailing block) as long as it
            # doesn't shrink the tile below ~half the budget.
            cand = ts
            floor = max(128, ts // 2)
            while cand >= floor and S % cand != 0:
                cand -= 128
            if cand >= floor and S % cand == 0:
                ts = cand
        # else: ragged S -> budget-capped ts + pl.cdiv grid; Pallas masks the
        # trailing partial block (no giant full-S block, no VMEM blowup).

    # v7x has 2 TensorCores per chip: keep at least 2 parallel grid steps.
    if batch * pl.cdiv(S, ts) < 2 and S > 128:
        half = pl.cdiv(S, 2)
        ts = max(128, ((half + 127) // 128) * 128)

    return ts


def discriminator_forward(x_nchw, weight):
    """Forward pass of Discriminator: 1x1 conv (1 out channel, no bias) + sigmoid.

    x_nchw: (N, C, H, W); weight: (1, C, 1, 1) in PyTorch conv layout.
    Returns (N, 1, H, W), matching the PyTorch module.
    """
    N, C, H, W = x_nchw.shape
    S = H * W

    # Pure reshapes only (no transposes, no padding): NCHW -> (N, C, S).
    x_ncs = x_nchw.reshape(N, C, S)
    # Keep the weight row in f32 (single vreg); avoids a wrapper downcast +
    # in-kernel upcast double-rounding when x is bf16.
    w_row = weight.reshape(1, C).astype(jnp.float32)

    tile_budget, vmem_limit = _vmem_budgets()
    ts = _pick_spatial_tile(S, C, x_nchw.dtype.itemsize, tile_budget, N)
    n_sblk = pl.cdiv(S, ts)

    out = pl.pallas_call(
        _disc_kernel,
        out_shape=jax.ShapeDtypeStruct((N, 1, S), x_nchw.dtype),
        grid_spec=pltpu.PrefetchScalarGridSpec(
            num_scalar_prefetch=0,
            grid=(N, n_sblk),
            in_specs=[
                # (None, C, ts): N dim squeezed -> kernel sees (C, ts)
                pl.BlockSpec((None, C, ts), lambda n, s: (n, 0, s)),
                # Constant block: weight stays resident in VMEM for all steps.
                pl.BlockSpec((1, C), lambda n, s: (0, 0)),
            ],
            out_specs=pl.BlockSpec((None, 1, ts), lambda n, s: (n, 0, s)),
        ),
        compiler_params=pltpu.CompilerParams(
            dimension_semantics=("parallel", "parallel"),
            vmem_limit_bytes=vmem_limit,
        ),
    )(x_ncs, w_row)

    # (N, 1, S) -> (N, 1, H, W): pure reshape, already in NCHW order.
    return out.reshape(N, 1, H, W)


if __name__ == "__main__":
    # Small shapes consistent with the module: cnum=4 -> in_channels = cnum*16 = 64
    cnum = 4
    N, C, H, W = 2, cnum * 16, 16, 16

    key = jax.random.PRNGKey(0)
    kx, kw = jax.random.split(key)
    x = jax.random.normal(kx, (N, C, H, W), dtype=jnp.float32)
    # Deterministic conv weight in PyTorch layout (out_ch=1, in_ch=C, 1, 1)
    weight = jax.random.normal(kw, (1, C, 1, 1), dtype=jnp.float32) * 0.05

    y = jax.block_until_ready(discriminator_forward(x, weight))

    # Reference in plain JAX: 1x1 conv == channel dot product, then sigmoid.
    ref = jax.nn.sigmoid(
        jnp.einsum("nchw,c->nhw", x, weight.reshape(C))
    )[:, None, :, :]

    assert y.shape == (N, 1, H, W), y.shape
    assert jnp.allclose(y, ref, atol=1e-5, rtol=1e-5), float(jnp.max(jnp.abs(y - ref)))

    print("KERNEL_OK")
</pallas_src>

<mosaic_0001>
module attributes {stable_mosaic.version = 11 : i64} {
  func.func @_disc_kernel(%arg0: i32, %arg1: i32, %arg2: memref<1x64x256xf32, #tpu.memory_space<vmem>>, %arg3: memref<1x64xf32, #tpu.memory_space<vmem>>, %arg4: memref<1x1x256xf32, #tpu.memory_space<vmem>>) attributes {dimension_semantics = [#tpu.dimension_semantics<parallel>, #tpu.dimension_semantics<parallel>], iteration_bounds = array<i64: 2, 1>, scalar_prefetch = 0 : i64, scratch_operands = 0 : i64, tpu.core_type = #tpu.core_type<tc>, window_params = [{transform_indices = @transform_0, window_bounds = array<i64: 1, 64, 256>}, {pipeline_mode = #tpu.pipeline_mode<synchronous>, transform_indices = @transform_1, window_bounds = array<i64: 1, 64>}, {transform_indices = @transform_2, window_bounds = array<i64: 1, 1, 256>}]} {
    %c0 = arith.constant 0 : index
    %c0_0 = arith.constant 0 : index
    %c0_1 = arith.constant 0 : index
    %0 = vector.load %arg2[%c0, %c0_0, %c0_1] : memref<1x64x256xf32, #tpu.memory_space<vmem>>, vector<1x64x256xf32>
    %1 = vector.shape_cast %0 : vector<1x64x256xf32> to vector<64x256xf32>
    %c0_2 = arith.constant 0 : index
    %c0_3 = arith.constant 0 : index
    %2 = vector.load %arg3[%c0_2, %c0_3] : memref<1x64xf32, #tpu.memory_space<vmem>>, vector<1x64xf32>
    %cst = arith.constant dense<0.000000e+00> : vector<1x256xf32>
    %3 = tpu.matmul %2, %1, %cst {dimension_numbers = #tpu.dot_dimension_numbers<[1], [0], [0], [1], [0, 0, 1, 1], [], []>} : vector<1x64xf32>, vector<64x256xf32>, vector<1x256xf32> -> vector<1x256xf32>
    %4 = arith.negf %3 : vector<1x256xf32>
    %5 = math.exp %4 : vector<1x256xf32>
    %cst_4 = arith.constant 1.000000e+00 : f32
    %6 = vector.broadcast %cst_4 : f32 to vector<1x256xf32>
    %7 = arith.addf %6, %5 : vector<1x256xf32>
    %8 = arith.divf %6, %7 : vector<1x256xf32>
    %c0_5 = arith.constant 0 : index
    %c0_6 = arith.constant 0 : index
    %c0_7 = arith.constant 0 : index
    %9 = vector.load %arg4[%c0_5, %c0_6, %c0_7] : memref<1x1x256xf32, #tpu.memory_space<vmem>>, vector<1x1x256xf32>
    %10 = vector.shape_cast %9 : vector<1x1x256xf32> to vector<1x256xf32>
    %11 = vector.shape_cast %8 : vector<1x256xf32> to vector<1x1x256xf32>
    tpu.vector_store %arg4[%c0_5, %c0_6, %c0_7], %11 {strides = array<i32>} : memref<1x1x256xf32, #tpu.memory_space<vmem>>, vector<1x1x256xf32>,
    return
  }
  func.func @transform_0(%arg0: i32, %arg1: i32) -> (i32, i32, i32) {
    %c0_i32 = arith.constant 0 : i32
    %c0_i32_0 = arith.constant 0 : i32
    return %arg0, %c0_i32, %arg1 : i32, i32, i32
  }
  func.func @transform_1(%arg0: i32, %arg1: i32) -> (i32, i32) {
    %c0_i32 = arith.constant 0 : i32
    %c0_i32_0 = arith.constant 0 : i32
    %c0_i32_1 = arith.constant 0 : i32
    return %c0_i32, %c0_i32_0 : i32, i32
  }
  func.func @transform_2(%arg0: i32, %arg1: i32) -> (i32, i32, i32) {
    %c0_i32 = arith.constant 0 : i32
    %c0_i32_0 = arith.constant 0 : i32
    return %arg0, %c0_i32, %arg1 : i32, i32, i32
  }
}

</mosaic_0001>

<llo_original>
// kernel: tpu_custom_call.1
$region0: #{tpu_custom_call.1}
  #allocation0 [shape = 'u32[]', space=smem, size = 0x4, offset = 0x4, fixed_abs, tag = 'smem constant byte address 0x4 - core index']
  #allocation1 [shape = 'u32[144,128]{1,0:T(1,128)}', space=vmem, size = 0x12000, scoped, tag = 'internal scratch']
  %s0 = inlined_call_operand.hbm [shape: f32[2,64,256], index: 0, kind: input, shape index: {}]
  %s1 = inlined_call_operand.vmem [shape: f32[1,64], index: 1, kind: input, shape index: {}]
  %s2 = inlined_call_operand.hbm [shape: f32[2,1,256], index: 2, kind: output, shape index: {}]
  %s3 = sld [smem:[#allocation0]]
  $region45: #{tpu_custom_call.1} parent=0
    _
  %s5 = ssub.s32 1, %s3
  %s6 = scalar_select 0, %s5, %s3
  $region1: #{tpu_custom_call.1} parent=0
    #allocation2 [shape = 'u8[131072]{0}', space=vmem, size = 0x20000, scoped, tag = 'input window, operand 0']
    #allocation3 [shape = 's32[2]{0}', space=sflag, size = 0x8, scoped, tag = 'scoped memory for tpu_custom_call.1']
    #allocation4 [shape = 's32[2]{0}', space=sflag, size = 0x8, scoped, tag = 'scoped memory for tpu_custom_call.1']
    #allocation5 [shape = 'u8[2048]{0}', space=vmem, size = 0x800, scoped, tag = 'output window, operand 0']
    %7 = vsyncpa [#allocation3], 0
    %s8 = scalar_lea.sflag [#allocation3], 1
    %9 = vsyncpa %s8, 0
    %10 = vsyncpa [#allocation4], 0
    %s11 = scalar_lea.sflag [#allocation4], 1
    %12 = vsyncpa %s11, 0
    loop: start=0, step=1, limit=4
    $region2: #{tpu_custom_call.1} parent=1 // loop_pre_header
      _
    $region3: #{tpu_custom_call.1} parent=1 // loop_header
      %s14 = sphi 0, %s18
      %p15 = scmp.ge.s32.totalorder %s14, 4
      %s21 = sphi 0, %s33
      %s22 = sphi 0, %s29
      %s23 = sphi 0, %s21
      %s24 = sphi 0, %s22
      %s25 = sphi 0, %s23
      %s26 = sphi 0, %s24
      %s38 = sphi 0, %s40
      %s41 = sphi 0, %s38
      %s42 = sphi 0, %s41
      %s58 = sphi 0, %s42
      %s62 = sphi 0, %s62
      %s64 = sphi 0, %s62
      %s65 = sphi 0, %s64
      %s79 = sphi 0, %s65
      %s87 = sphi 0, %s89
      %s90 = sphi 0, %s87
      %s91 = sphi 0, %s90
      %s107 = sphi 0, %s91
    $region4: #{tpu_custom_call.1} parent=1 // loop_header_branch
      %17 = sbr.rel (%p15) target = $region8
    $region5: #{tpu_custom_call.1} parent=1 // loop_body
      %s19 = ssub.s32 %s14, 1
      %s20 = ssub.s32 %s14, 2
      %s27 = sadd.s32 1, %s22
      %p28 = scmp.ge.s32.totalorder %s27, 1
      %s29 = scalar_select %p28, 0, %s27
      %s30 = sadd.s32 1, %s21
      %s31 = scalar_select %p28, %s30, %s21
      %p32 = scmp.ge.s32.totalorder %s31, 2
      %s33 = scalar_select %p32, 0, %s31
      %s34 = ssub.s32 %s21, %s33
      %s35 = ssub.s32 %s22, %s29
      %s36 = sor.u32 %s34, %s35
      %p37 = scmp.eq.s32.totalorder %s36, 0
      %s39 = sadd.s32 %s38, 1
      %s40 = scalar_select %p37, %s38, %s39
      %p43 = pneg %p37
      %p44 = scmp.eq.s32.totalorder %s14, 1
      %p45 = por %p43, %p44
      %p46 = scmp.ne.s32.totalorder %s38, %s41
      %p47 = scmp.eq.s32.totalorder %s14, 0
      %p48 = por %p46, %p47
      %p49 = scmp.ne.s32.totalorder %s38, %s41
      %p50 = scmp.eq.s32.totalorder %s19, 1
      %p51 = por %p49, %p50
      %p52 = scmp.ne.s32.totalorder %s41, %s42
      %p53 = scmp.eq.s32.totalorder %s19, 0
      %p54 = por %p52, %p53
      %p55 = scmp.ne.s32.totalorder %s41, %s42
      %p56 = scmp.eq.s32.totalorder %s20, 1
      %p57 = por %p55, %p56
      %p59 = scmp.ne.s32.totalorder %s42, %s58
      %p60 = scmp.eq.s32.totalorder %s20, 0
      %p61 = por %p59, %p60
      %s63 = sadd.s32 %s62, 1
      %p66 = scmp.eq.s32.totalorder %s14, 1
      %p67 = scmp.ne.s32.totalorder %s62, %s64
      %p68 = scmp.eq.s32.totalorder %s14, 0
      %p69 = por %p67, %p68
      %p70 = scmp.ne.s32.totalorder %s62, %s64
      %p71 = scmp.eq.s32.totalorder %s19, 1
      %p72 = por %p70, %p71
      %p73 = scmp.ne.s32.totalorder %s64, %s65
      %p74 = scmp.eq.s32.totalorder %s19, 0
      %p75 = por %p73, %p74
      %p76 = scmp.ne.s32.totalorder %s64, %s65
      %p77 = scmp.eq.s32.totalorder %s20, 1
      %p78 = por %p76, %p77
      %p80 = scmp.ne.s32.totalorder %s65, %s79
      %p81 = scmp.eq.s32.totalorder %s20, 0
      %p82 = por %p80, %p81
      %s83 = ssub.s32 %s21, %s33
      %s84 = ssub.s32 %s22, %s29
      %s85 = sor.u32 %s83, %s84
      %p86 = scmp.eq.s32.totalorder %s85, 0
      %s88 = sadd.s32 %s87, 1
      %s89 = scalar_select %p86, %s87, %s88
      %p92 = pneg %p86
      %p93 = scmp.eq.s32.totalorder %s14, 1
      %p94 = por %p92, %p93
      %p95 = scmp.ne.s32.totalorder %s87, %s90
      %p96 = scmp.eq.s32.totalorder %s14, 0
      %p97 = por %p95, %p96
      %p98 = scmp.ne.s32.totalorder %s87, %s90
      %p99 = scmp.eq.s32.totalorder %s19, 1
      %p100 = por %p98, %p99
      %p101 = scmp.ne.s32.totalorder %s90, %s91
      %p102 = scmp.eq.s32.totalorder %s19, 0
      %p103 = por %p101, %p102
      %p104 = scmp.ne.s32.totalorder %s90, %s91
      %p105 = scmp.eq.s32.totalorder %s20, 1
      %p106 = por %p104, %p105
      %p108 = scmp.ne.s32.totalorder %s91, %s107
      %p109 = scmp.eq.s32.totalorder %s20, 0
      %p110 = por %p108, %p109
      %p111 = scmp.le.s32.totalorder 1, %s14
      %p112 = scmp.lt.s32.totalorder %s14, 3
      %p113 = pnand %p111, %p112
      %p114 = pneg %p113
      // Predicated region
      $region9: #{tpu_custom_call.1} parent=5 // pred_check
        _
      $region10: #{tpu_custom_call.1} parent=5 // pred_check_branch
        %116 = sbr.rel (%p113) target = $region12
      $region11: #{tpu_custom_call.1} parent=5 // pred_region
        %s117 = ssub.s32 %s14, 1
        // Predicated region
        $region13: #{tpu_custom_call.1} parent=11 // pred_check
          %p118 = pneg %p75
        $region14: #{tpu_custom_call.1} parent=11 // pred_check_branch
          %120 = sbr.rel (%p118) target = $region16
        $region15: #{tpu_custom_call.1} parent=11 // pred_region
          _
        $region16: #{tpu_custom_call.1} parent=11 // pred_fallthru
          _
      $region12: #{tpu_custom_call.1} parent=5 // pred_fallthru
        _
      %p121 = scmp.lt.s32.totalorder %s14, 2
      // Predicated region
      $region17: #{tpu_custom_call.1} parent=5 // pred_check
        %p122 = pneg %p121
      $region18: #{tpu_custom_call.1} parent=5 // pred_check_branch
        %124 = sbr.rel (%p122) target = $region20
      $region19: #{tpu_custom_call.1} parent=5 // pred_region
        // Predicated region
        $region21: #{tpu_custom_call.1} parent=19 // pred_check
          %p125 = pneg %p48
        $region22: #{tpu_custom_call.1} parent=19 // pred_check_branch
          %127 = sbr.rel (%p125) target = $region24
        $region23: #{tpu_custom_call.1} parent=19 // pred_region
          %s128 = sand.u32 %s38, 1
          %s129 = scalar_lea.sflag [#allocation3], %s128
          %s130 = sand.u32 %s38, 1
          %s131 = smul.addr %s130, 128
          %s132 = scalar_lea.vmem [#allocation2], %s131
          %s133 = smul.u32 2, %s22
          %s135 = ssub.s32 2048, 2048
          %136 = vsyncadd %s129, %s135
          %s137 = smul.addr %s21, 16
          %s138 = sadd.s32 %s133, %s137
          %s139 = smul.addr %s138, 128
          %s140 = scalar_lea.hbm %s0, %s139
          %s141 = sshll.u32 %s132, 4
          %s142 = int_to_ptr.vmem [resolvable:$true] %s141
          %147 = dma.hbm_to_vmem [thread:$0]  %s140, 2048, %s142, %s129, 256, 256, 16
        $region24: #{tpu_custom_call.1} parent=19 // pred_fallthru
          _
      $region20: #{tpu_custom_call.1} parent=5 // pred_fallthru
        _
      %p148 = scmp.le.s32.totalorder 1, %s14
      %p149 = scmp.lt.s32.totalorder %s14, 3
      %p150 = pnand %p148, %p149
      %p151 = pneg %p150
      // Predicated region
      $region25: #{tpu_custom_call.1} parent=5 // pred_check
        _
      $region26: #{tpu_custom_call.1} parent=5 // pred_check_branch
        %153 = sbr.rel (%p150) target = $region28
      $region27: #{tpu_custom_call.1} parent=5 // pred_region
        %s154 = ssub.s32 %s14, 1
        %s155 = sand.u32 %s41, 1
        %s156 = scalar_lea.sflag [#allocation3], %s155
        %s157 = sand.u32 %s41, 1
        %s158 = smul.addr %s157, 128
        %s159 = scalar_lea.vmem [#allocation2], %s158
        // Predicated region
        $region29: #{tpu_custom_call.1} parent=27 // pred_check
          %p160 = pneg %p54
        $region30: #{tpu_custom_call.1} parent=27 // pred_check_branch
          %162 = sbr.rel (%p160) target = $region32
        $region31: #{tpu_custom_call.1} parent=27 // pred_region
          %163 = dma.done %s156, 2048
        $region32: #{tpu_custom_call.1} parent=27 // pred_fallthru
          _
        %s164 = sand.u32 %s41, 1
        %s165 = scalar_lea.sflag [#allocation3], %s164
        %s166 = sand.u32 %s41, 1
        %s167 = smul.addr %s166, 128
        %s168 = scalar_lea.vmem [#allocation2], %s167
        %p169 = pneg %p54
        %p170 = pneg %p51
        %p171 = pneg %p75
        %p172 = pneg %p72
        %p173 = pneg %p103
        %p174 = pneg %p100
        %s175 = sand.u32 %s90, 1
        %s176 = scalar_lea.sflag [#allocation4], %s175
        %s177 = sand.u32 %s90, 1
        %s178 = smul.addr %s177, 2
        %s179 = scalar_lea.vmem [#allocation5], %s178
        %s180 = smul.u32 2, %s24
        %s181 = smul.u32 2, %s24
        %v182 = vld [vmem:[%s159] sm:$0xff]
        %v183 = vld [vmem:[%s159 + $0x8] sm:$0xff]
        %v184 = vld [vmem:[%s159 + $0x10] sm:$0xff]
        %v185 = vld [vmem:[%s159 + $0x18] sm:$0xff]
        %v186 = vld [vmem:[%s159 + $0x20] sm:$0xff]
        %v187 = vld [vmem:[%s159 + $0x28] sm:$0xff]
        %v188 = vld [vmem:[%s159 + $0x30] sm:$0xff]
        %v189 = vld [vmem:[%s159 + $0x38] sm:$0xff]
        %v190 = vld [vmem:[%s159 + $0x40] sm:$0xff]
        %v191 = vld [vmem:[%s159 + $0x48] sm:$0xff]
        %v192 = vld [vmem:[%s159 + $0x50] sm:$0xff]
        %v193 = vld [vmem:[%s159 + $0x58] sm:$0xff]
        %v194 = vld [vmem:[%s159 + $0x60] sm:$0xff]
        %v195 = vld [vmem:[%s159 + $0x68] sm:$0xff]
        %v196 = vld [vmem:[%s159 + $0x70] sm:$0xff]
        %v197 = vld [vmem:[%s159 + $0x78] sm:$0xff]
        %v198 = vld [vmem:[%s1] sm:$0x1]
        %vm199 = vcmask 523264
        %v201 = vsel %vm199, %v198, 0
        %203 = vmatprep.subr.mxu0 %v183
        %204 = vmatpush1.msra.mxu0 %v182
        %205 = vmatprep.subr.mxu0 %v185
        %206 = vmatpush1.msra.mxu0 %v184
        %207 = vmatprep.subr.mxu0 %v187
        %208 = vmatpush1.msra.mxu0 %v186
        %209 = vmatprep.subr.mxu0 %v189
        %210 = vmatpush1.msra.mxu0 %v188
        %211 = vmatprep.subr.mxu0 %v191
        %212 = vmatpush1.msra.mxu0 %v190
        %213 = vmatprep.subr.mxu0 %v193
        %214 = vmatpush1.msra.mxu0 %v192
        %215 = vmatprep.subr.mxu0 %v195
        %216 = vmatpush1.msra.mxu0 %v194
        %217 = vmatprep.subr.mxu0 %v197
        %218 = vmatpush1.msra.mxu0 %v196
        %219 = vmatprep.subr.mxu0 0.0
        %220 = vmatpush1.msra.mxu0 0.0
        %221 = vmatprep.subr.mxu0 0.0
        %222 = vmatpush1.msra.mxu0 0.0
        %223 = vmatprep.subr.mxu0 0.0
        %224 = vmatpush1.msra.mxu0 0.0
        %225 = vmatprep.subr.mxu0 0.0
        %226 = vmatpush1.msra.mxu0 0.0
        %227 = vmatprep.subr.mxu0 0.0
        %228 = vmatpush1.msra.mxu0 0.0
        %229 = vmatprep.subr.mxu0 0.0
        %230 = vmatpush1.msra.mxu0 0.0
        %231 = vmatprep.subr.mxu0 0.0
        %232 = vmatpush1.msra.mxu0 0.0
        %233 = vmatprep.subr.mxu0 0.0
        %234 = vmatpush1.msra.mxu0 0.0
        %235 = vmatprep.subr.mxu0 0.0
        %236 = vmatpush1.msra.mxu0 0.0
        %237 = vmatprep.subr.mxu0 0.0
        %238 = vmatpush1.msra.mxu0 0.0
        %239 = vmatprep.subr.mxu0 0.0
        %240 = vmatpush1.msra.mxu0 0.0
        %241 = vmatprep.subr.mxu0 0.0
        %242 = vmatpush1.msra.mxu0 0.0
        %243 = vmatprep.subr.mxu0 0.0
        %244 = vmatpush1.msra.mxu0 0.0
        %245 = vmatprep.subr.mxu0 0.0
        %246 = vmatpush1.msra.mxu0 0.0
        %247 = vmatprep.subr.mxu0 0.0
        %248 = vmatpush1.msra.mxu0 0.0
        %249 = vmatprep.subr.mxu0 0.0
        %250 = vmatpush1.msra.mxu0 0.0
        %251 = vmatprep.subr.mxu0 0.0
        %252 = vmatpush1.msra.mxu0 0.0
        %253 = vmatprep.subr.mxu0 0.0
        %254 = vmatpush1.msra.mxu0 0.0
        %255 = vmatprep.subr.mxu0 0.0
        %256 = vmatpush1.msra.mxu0 0.0
        %257 = vmatprep.subr.mxu0 0.0
        %258 = vmatpush1.msra.mxu0 0.0
        %259 = vmatprep.subr.mxu0 0.0
        %260 = vmatpush1.msra.mxu0 0.0
        %261 = vmatprep.subr.mxu0 0.0
        %262 = vmatpush1.msra.mxu0 0.0
        %263 = vmatprep.subr.mxu0 0.0
        %264 = vmatpush1.msra.mxu0 0.0
        %265 = vmatprep.subr.mxu0 0.0
        %266 = vmatpush1.msra.mxu0 0.0
        %267 = vmatprep.mubr.f32.mxu0 0.0
        %268 = vmatmul.mubr.f32.gmra.mrb[0].mxu0 %v201
        %v269 = vpop.f32.mrb[0].mxu0
        %v270 = vadd.f32 0.0, %v269
        %v271 = vpop.f32.mrb[0].mxu0
        %v272 = vadd.f32 0.0, %v271
        %273 = vdwg.mxu0
        %v274 = vxor.u32 %v270, 2147483648
        %v275 = vxor.u32 %v272, 2147483648
        %v276 = vmul.f32 %v274, 1.442695
        %v277 = vpow.pop %v276
        %v278 = vmul.f32 %v275, 1.442695
        %v279 = vpow.pop %v278
        %v280 = vadd.f32 %v277, 1.0
        %v281 = vadd.f32 %v279, 1.0
        %v282 = vrcp.pop %v280
        %v283 = vmul.f32 1.0, %v282
        %v284 = vrcp.pop %v281
        %v285 = vmul.f32 1.0, %v284
        %v288 = vcombine.low %v283, %v285
        %v290 = vunpack.c.l.s4 1966171168
        %v291 = vunpack.c.0.s8 %v290
        %v292 = vlaneseq
        %v293 = vshrl.u32 %v292, 7
        %v294 = vsub.s32 %v291, %v293
        %v295 = vrot.slane %v288, %v294
        %v297 = vunpack.c.l.s4 1966171168
        %v298 = vunpack.c.0.s8 %v297
        %v299 = vlaneseq
        %v300 = vshrl.u32 %v299, 7
        %v301 = vsub.s32 %v298, %v300
        %v302 = vrot.slane %v295, %v301
        %v304 = vlaneseq
        %vm305 = vcmp.ge.s32.totalorder %v304, 0
        %vm306 = vcmp.lt.s32.totalorder %v304, 256
        %vm307 = vmand %vm305, %vm306
        %308 = vst.msk [vmem:[%s179] sm:$0x3] %vm307, %v302
        %s309 = sand.u32 %s90, 1
        %s310 = scalar_lea.sflag [#allocation4], %s309
        %s311 = sand.u32 %s90, 1
        %s312 = smul.addr %s311, 2
        %s313 = scalar_lea.vmem [#allocation5], %s312
        // Predicated region
        $region33: #{tpu_custom_call.1} parent=27 // pred_check
          %p314 = pneg %p100
        $region34: #{tpu_custom_call.1} parent=27 // pred_check_branch
          %316 = sbr.rel (%p314) target = $region36
        $region35: #{tpu_custom_call.1} parent=27 // pred_region
          %s317 = smul.u32 2, %s24
          %s319 = ssub.s32 32, 32
          %320 = vsyncadd %s310, %s319
          %s321 = smul.addr %s23, 2
          %s322 = sadd.s32 %s317, %s321
          %s323 = smul.addr %s322, 16
          %s324 = scalar_lea.hbm %s2, %s323
          %s326 = sshll.u32 %s313, 4
          %s327 = int_to_ptr.vmem [resolvable:$true] %s326
          %329 = dma.vmem_to_hbm [thread:$0]  %s327, 32, %s324, %s310
        $region36: #{tpu_custom_call.1} parent=27 // pred_fallthru
          _
      $region28: #{tpu_custom_call.1} parent=5 // pred_fallthru
        _
      %p330 = scmp.le.s32.totalorder 2, %s14
      // Predicated region
      $region37: #{tpu_custom_call.1} parent=5 // pred_check
        %p331 = pneg %p330
      $region38: #{tpu_custom_call.1} parent=5 // pred_check_branch
        %333 = sbr.rel (%p331) target = $region40
      $region39: #{tpu_custom_call.1} parent=5 // pred_region
        %s334 = ssub.s32 %s14, 2
        // Predicated region
        $region41: #{tpu_custom_call.1} parent=39 // pred_check
          %p335 = pneg %p106
        $region42: #{tpu_custom_call.1} parent=39 // pred_check_branch
          %337 = sbr.rel (%p335) target = $region44
        $region43: #{tpu_custom_call.1} parent=39 // pred_region
          %s338 = sand.u32 %s91, 1
          %s339 = scalar_lea.sflag [#allocation4], %s338
          %s340 = sand.u32 %s91, 1
          %s341 = smul.addr %s340, 2
          %s342 = scalar_lea.vmem [#allocation5], %s341
          %343 = dma.done %s339, 32
        $region44: #{tpu_custom_call.1} parent=39 // pred_fallthru
          _
      $region40: #{tpu_custom_call.1} parent=5 // pred_fallthru
        _
    $region6: #{tpu_custom_call.1} parent=1 // loop_footer
      %s18 = sadd.s32 1, %s14
    $region7: #{tpu_custom_call.1} parent=1 // loop_footer_branch
      %13 = sbr.rel target = $region3
    $region8: #{tpu_custom_call.1} parent=1 // loop_exit
      _
    %344 = vsyncpa [#allocation3], 1
    %s345 = scalar_lea.sflag [#allocation3], 1
    %346 = vsyncpa %s345, 1
    %347 = vsyncpa [#allocation4], 1
    %s348 = scalar_lea.sflag [#allocation4], 1
    %349 = vsyncpa %s348, 1

</llo_original>
